<compile_context>
chip_gen: v7x
topology: tpu7x:2x2x1
jax: 0.10.0
libtpu: 0.0.40
codegen_flags: <defaults>
</compile_context>

<pallas_src>
import jax
import jax.numpy as jnp
from jax.experimental import pallas as pl
from jax.experimental.pallas import tpu as pltpu

SMOOTH = 1e-5


def _pick_lane_block(hw, max_block=8192):
    """Largest lane block that is a multiple of 128 and divides hw (or full hw)."""
    if hw <= max_block:
        return hw
    blk = (max_block // 128) * 128
    while blk >= 128:
        if hw % blk == 0:
            return blk
        blk -= 128
    return hw  # fallback: single full-width block (block dim == array dim is legal)


def _make_dice_sums_kernel(n_classes, thresholds_full, apply_softmax):
    c = n_classes

    def kernel(p_ref, t_ref, o_ref):
        # p_ref: (C, L) logits, t_ref: (1, L) target, o_ref: (3*C, L) partials.
        j = pl.program_id(1)

        @pl.when(j == 0)
        def _():
            o_ref[...] = jnp.zeros_like(o_ref)

        logits = p_ref[...]            # (C, L) f32
        t = t_ref[...]                 # (1, L) f32
        lanes = logits.shape[1]

        if apply_softmax:
            m = jnp.max(logits, axis=0, keepdims=True)     # (1, L)
            e = jnp.exp(logits - m)                        # (C, L): 1 EUP op/elem
            den = jnp.sum(e, axis=0, keepdims=True)        # (1, L)
            probs = e / den                                # (C, L)
        else:
            probs = logits

        # class index: sequential threshold overwrites (matches the torch loop,
        # last writer wins).
        cls = jnp.zeros(t.shape, dtype=jnp.int32)
        for i, thr in enumerate(thresholds_full):
            cls = jnp.where(t >= thr, jnp.int32(i), cls)

        # one-hot along the class (sublane) axis.
        class_ids = jax.lax.broadcasted_iota(jnp.int32, (c, lanes), 0)
        onehot = (class_ids == cls).astype(jnp.float32)    # (C, L)

        # Accumulate per-class, per-lane partial sums (pure VPU work).
        o_ref[0:c, :] += probs * onehot            # intersect
        o_ref[c:2 * c, :] += onehot                # y_sum
        o_ref[2 * c:3 * c, :] += probs * probs     # z_sum

    return kernel


def dice_loss(inputs, target, *, n_classes, thresholds, weights=None,
              apply_softmax=True, max_lane_block=8192):
    """Matches DiceLoss.forward(inputs, target, softmax=apply_softmax)."""
    n, c, h, w = inputs.shape
    assert c == n_classes
    assert target.shape == (n, h, w)
    hw = h * w
    lane_blk = _pick_lane_block(hw, max_lane_block)
    grid = (n, hw // lane_blk)

    thresholds_full = tuple([0.0] + list(thresholds))

    p3 = inputs.reshape(n, c, hw).astype(jnp.float32)
    t3 = target.reshape(n, 1, hw).astype(jnp.float32)

    kernel = _make_dice_sums_kernel(n_classes, thresholds_full, apply_softmax)

    partials = pl.pallas_call(
        kernel,
        out_shape=jax.ShapeDtypeStruct((n, 3 * c, lane_blk), jnp.float32),
        grid_spec=pltpu.PrefetchScalarGridSpec(
            num_scalar_prefetch=0,
            grid=grid,
            in_specs=[
                pl.BlockSpec((None, c, lane_blk), lambda i, j: (i, 0, j)),
                pl.BlockSpec((None, 1, lane_blk), lambda i, j: (i, 0, j)),
            ],
            out_specs=pl.BlockSpec((None, 3 * c, lane_blk),
                                   lambda i, j: (i, 0, 0)),
        ),
        compiler_params=pltpu.CompilerParams(
            dimension_semantics=("parallel", "arbitrary")),
    )(p3, t3)

    # Tiny epilogue in JAX glue: one cross-lane reduce + per-class dice ratio.
    sums = jnp.sum(partials, axis=(0, 2))          # (3*C,)
    intersect = sums[0:c]
    y_sum = sums[c:2 * c]
    z_sum = sums[2 * c:3 * c]
    if weights is None:
        wts = jnp.ones((c,), jnp.float32)
    else:
        wts = jnp.asarray(weights, jnp.float32)
    dice = (2.0 * intersect + SMOOTH) / (z_sum + y_sum + SMOOTH)
    loss = jnp.sum((1.0 - dice) * wts) / n_classes
    return loss.astype(jnp.float32)


def _dice_loss_ref(inputs, target, *, n_classes, thresholds, apply_softmax=True):
    """Pure-JAX reference mirroring the PyTorch module."""
    x = jax.nn.softmax(inputs, axis=1) if apply_softmax else inputs
    cls = jnp.zeros(target.shape, jnp.int32)
    for i, thr in enumerate([0.0] + list(thresholds)):
        cls = jnp.where(target >= thr, i, cls)
    onehot = jax.nn.one_hot(cls, n_classes, axis=1, dtype=jnp.float32)
    loss = 0.0
    for i in range(n_classes):
        s = x[:, i]
        tt = onehot[:, i]
        inter = jnp.sum(s * tt)
        y = jnp.sum(tt * tt)
        z = jnp.sum(s * s)
        loss = loss + (1.0 - (2.0 * inter + SMOOTH) / (z + y + SMOOTH))
    return loss / n_classes


if __name__ == "__main__":
    key = jax.random.PRNGKey(0)
    k1, k2 = jax.random.split(key)

    N, C, H, W = 2, 4, 16, 16
    thresholds = (0.25, 0.5, 0.75)          # n_classes = 1 + len(thresholds)

    inputs = jax.random.normal(k1, (N, C, H, W), dtype=jnp.float32)
    target = jax.random.uniform(k2, (N, H, W), dtype=jnp.float32)

    out = jax.block_until_ready(
        dice_loss(inputs, target, n_classes=C, thresholds=thresholds))
    ref = jax.block_until_ready(
        _dice_loss_ref(inputs, target, n_classes=C, thresholds=thresholds))

    assert jnp.allclose(out, ref, rtol=1e-5, atol=1e-5), (out, ref)
    print("KERNEL_OK")
</pallas_src>

<mosaic_0001>
module attributes {stable_mosaic.version = 11 : i64} {
  func.func @kernel(%arg0: i32, %arg1: i32, %arg2: memref<1x4x256xf32, #tpu.memory_space<vmem>>, %arg3: memref<1x1x256xf32, #tpu.memory_space<vmem>>, %arg4: memref<1x12x256xf32, #tpu.memory_space<vmem>>) attributes {dimension_semantics = [#tpu.dimension_semantics<parallel>, #tpu.dimension_semantics<arbitrary>], iteration_bounds = array<i64: 2, 1>, scalar_prefetch = 0 : i64, scratch_operands = 0 : i64, tpu.core_type = #tpu.core_type<tc>, window_params = [{transform_indices = @transform_0, window_bounds = array<i64: 1, 4, 256>}, {transform_indices = @transform_1, window_bounds = array<i64: 1, 1, 256>}, {transform_indices = @transform_2, window_bounds = array<i64: 1, 12, 256>}]} {
    %c0_i32 = arith.constant 0 : i32
    %0 = arith.cmpi eq, %arg1, %c0_i32 : i32
    %1 = arith.extui %0 : i1 to i32
    %c0_i32_0 = arith.constant 0 : i32
    %2 = arith.cmpi ne, %1, %c0_i32_0 : i32
    scf.if %2 {
      %cst_29 = arith.constant 0.000000e+00 : f32
      %58 = vector.broadcast %cst_29 : f32 to vector<12x256xf32>
      %c0_30 = arith.constant 0 : index
      %c0_31 = arith.constant 0 : index
      %c0_32 = arith.constant 0 : index
      %59 = vector.load %arg4[%c0_30, %c0_31, %c0_32] : memref<1x12x256xf32, #tpu.memory_space<vmem>>, vector<1x12x256xf32>
      %60 = vector.shape_cast %59 : vector<1x12x256xf32> to vector<12x256xf32>
      %61 = vector.shape_cast %58 : vector<12x256xf32> to vector<1x12x256xf32>
      tpu.vector_store %arg4[%c0_30, %c0_31, %c0_32], %61 {strides = array<i32>} : memref<1x12x256xf32, #tpu.memory_space<vmem>>, vector<1x12x256xf32>,
    } else {
    }
    %c0 = arith.constant 0 : index
    %c0_1 = arith.constant 0 : index
    %c0_2 = arith.constant 0 : index
    %3 = vector.load %arg2[%c0, %c0_1, %c0_2] : memref<1x4x256xf32, #tpu.memory_space<vmem>>, vector<1x4x256xf32>
    %4 = vector.shape_cast %3 : vector<1x4x256xf32> to vector<4x256xf32>
    %c0_3 = arith.constant 0 : index
    %c0_4 = arith.constant 0 : index
    %c0_5 = arith.constant 0 : index
    %5 = vector.load %arg3[%c0_3, %c0_4, %c0_5] : memref<1x1x256xf32, #tpu.memory_space<vmem>>, vector<1x1x256xf32>
    %6 = vector.shape_cast %5 : vector<1x1x256xf32> to vector<1x256xf32>
    %cst = arith.constant dense<0xFF800000> : vector<256xf32>
    %7 = vector.multi_reduction <maximumf>, %4, %cst [0] : vector<4x256xf32> to vector<256xf32>
    %8 = vector.shape_cast %7 : vector<256xf32> to vector<1x256xf32>
    %9 = vector.broadcast %8 : vector<1x256xf32> to vector<4x256xf32>
    %10 = arith.subf %4, %9 : vector<4x256xf32>
    %11 = math.exp %10 : vector<4x256xf32>
    %cst_6 = arith.constant dense<0.000000e+00> : vector<256xf32>
    %12 = vector.multi_reduction <add>, %11, %cst_6 [0] : vector<4x256xf32> to vector<256xf32>
    %13 = vector.shape_cast %12 : vector<256xf32> to vector<1x256xf32>
    %14 = vector.broadcast %13 : vector<1x256xf32> to vector<4x256xf32>
    %15 = arith.divf %11, %14 : vector<4x256xf32>
    %c0_i32_7 = arith.constant 0 : i32
    %16 = vector.broadcast %c0_i32_7 : i32 to vector<1x256xi32>
    %cst_8 = arith.constant 0.000000e+00 : f32
    %17 = vector.broadcast %cst_8 : f32 to vector<1x256xf32>
    %18 = arith.cmpf oge, %6, %17 : vector<1x256xf32>
    %c0_i32_9 = arith.constant 0 : i32
    %19 = vector.broadcast %c0_i32_9 : i32 to vector<1x256xi32>
    %20 = arith.select %18, %19, %16 : vector<1x256xi1>, vector<1x256xi32>
    %cst_10 = arith.constant 2.500000e-01 : f32
    %21 = vector.broadcast %cst_10 : f32 to vector<1x256xf32>
    %22 = arith.cmpf oge, %6, %21 : vector<1x256xf32>
    %c1_i32 = arith.constant 1 : i32
    %23 = vector.broadcast %c1_i32 : i32 to vector<1x256xi32>
    %24 = arith.select %22, %23, %20 : vector<1x256xi1>, vector<1x256xi32>
    %cst_11 = arith.constant 5.000000e-01 : f32
    %25 = vector.broadcast %cst_11 : f32 to vector<1x256xf32>
    %26 = arith.cmpf oge, %6, %25 : vector<1x256xf32>
    %c2_i32 = arith.constant 2 : i32
    %27 = vector.broadcast %c2_i32 : i32 to vector<1x256xi32>
    %28 = arith.select %26, %27, %24 : vector<1x256xi1>, vector<1x256xi32>
    %cst_12 = arith.constant 7.500000e-01 : f32
    %29 = vector.broadcast %cst_12 : f32 to vector<1x256xf32>
    %30 = arith.cmpf oge, %6, %29 : vector<1x256xf32>
    %c3_i32 = arith.constant 3 : i32
    %31 = vector.broadcast %c3_i32 : i32 to vector<1x256xi32>
    %32 = arith.select %30, %31, %28 : vector<1x256xi1>, vector<1x256xi32>
    %33 = tpu.iota {dimensions = array<i32: 0>} : vector<4x256xi32>
    %34 = vector.broadcast %32 : vector<1x256xi32> to vector<4x256xi32>
    %35 = arith.cmpi eq, %33, %34 : vector<4x256xi32>
    %36 = arith.extui %35 : vector<4x256xi1> to vector<4x256xi32>
    %37 = arith.sitofp %36 : vector<4x256xi32> to vector<4x256xf32>
    %c0_13 = arith.constant 0 : index
    %c0_14 = arith.constant 0 : index
    %c0_15 = arith.constant 0 : index
    %38 = vector.load %arg4[%c0_13, %c0_14, %c0_15] : memref<1x12x256xf32, #tpu.memory_space<vmem>>, vector<1x4x256xf32>
    %39 = vector.shape_cast %38 : vector<1x4x256xf32> to vector<4x256xf32>
    %40 = arith.mulf %15, %37 : vector<4x256xf32>
    %41 = arith.addf %39, %40 : vector<4x256xf32>
    %c0_16 = arith.constant 0 : index
    %c0_17 = arith.constant 0 : index
    %c0_18 = arith.constant 0 : index
    %42 = vector.load %arg4[%c0_16, %c0_17, %c0_18] : memref<1x12x256xf32, #tpu.memory_space<vmem>>, vector<1x4x256xf32>
    %43 = vector.shape_cast %42 : vector<1x4x256xf32> to vector<4x256xf32>
    %44 = vector.shape_cast %41 : vector<4x256xf32> to vector<1x4x256xf32>
    tpu.vector_store %arg4[%c0_16, %c0_17, %c0_18], %44 {strides = array<i32>} : memref<1x12x256xf32, #tpu.memory_space<vmem>>, vector<1x4x256xf32>,
    %c0_19 = arith.constant 0 : index
    %c4 = arith.constant 4 : index
    %c0_20 = arith.constant 0 : index
    %45 = vector.load %arg4[%c0_19, %c4, %c0_20] : memref<1x12x256xf32, #tpu.memory_space<vmem>>, vector<1x4x256xf32>
    %46 = vector.shape_cast %45 : vector<1x4x256xf32> to vector<4x256xf32>
    %47 = arith.addf %46, %37 : vector<4x256xf32>
    %c0_21 = arith.constant 0 : index
    %c4_22 = arith.constant 4 : index
    %c0_23 = arith.constant 0 : index
    %48 = vector.load %arg4[%c0_21, %c4_22, %c0_23] : memref<1x12x256xf32, #tpu.memory_space<vmem>>, vector<1x4x256xf32>
    %49 = vector.shape_cast %48 : vector<1x4x256xf32> to vector<4x256xf32>
    %50 = vector.shape_cast %47 : vector<4x256xf32> to vector<1x4x256xf32>
    tpu.vector_store %arg4[%c0_21, %c4_22, %c0_23], %50 {strides = array<i32>} : memref<1x12x256xf32, #tpu.memory_space<vmem>>, vector<1x4x256xf32>,
    %c0_24 = arith.constant 0 : index
    %c8 = arith.constant 8 : index
    %c0_25 = arith.constant 0 : index
    %51 = vector.load %arg4[%c0_24, %c8, %c0_25] : memref<1x12x256xf32, #tpu.memory_space<vmem>>, vector<1x4x256xf32>
    %52 = vector.shape_cast %51 : vector<1x4x256xf32> to vector<4x256xf32>
    %53 = arith.mulf %15, %15 : vector<4x256xf32>
    %54 = arith.addf %52, %53 : vector<4x256xf32>
    %c0_26 = arith.constant 0 : index
    %c8_27 = arith.constant 8 : index
    %c0_28 = arith.constant 0 : index
    %55 = vector.load %arg4[%c0_26, %c8_27, %c0_28] : memref<1x12x256xf32, #tpu.memory_space<vmem>>, vector<1x4x256xf32>
    %56 = vector.shape_cast %55 : vector<1x4x256xf32> to vector<4x256xf32>
    %57 = vector.shape_cast %54 : vector<4x256xf32> to vector<1x4x256xf32>
    tpu.vector_store %arg4[%c0_26, %c8_27, %c0_28], %57 {strides = array<i32>} : memref<1x12x256xf32, #tpu.memory_space<vmem>>, vector<1x4x256xf32>,
    return
  }
  func.func @transform_0(%arg0: i32, %arg1: i32) -> (i32, i32, i32) {
    %c0_i32 = arith.constant 0 : i32
    %c0_i32_0 = arith.constant 0 : i32
    return %arg0, %c0_i32, %arg1 : i32, i32, i32
  }
  func.func @transform_1(%arg0: i32, %arg1: i32) -> (i32, i32, i32) {
    %c0_i32 = arith.constant 0 : i32
    %c0_i32_0 = arith.constant 0 : i32
    return %arg0, %c0_i32, %arg1 : i32, i32, i32
  }
  func.func @transform_2(%arg0: i32, %arg1: i32) -> (i32, i32, i32) {
    %c0_i32 = arith.constant 0 : i32
    %c0_i32_0 = arith.constant 0 : i32
    %c0_i32_1 = arith.constant 0 : i32
    return %arg0, %c0_i32, %c0_i32_0 : i32, i32, i32
  }
}

</mosaic_0001>

<llo_original>
// kernel: tpu_custom_call.1
$region0: #{tpu_custom_call.1}
  #allocation0 [shape = 'u32[]', space=smem, size = 0x4, offset = 0x4, fixed_abs, tag = 'smem constant byte address 0x4 - core index']
  #allocation1 [shape = 'u32[144,128]{1,0:T(1,128)}', space=vmem, size = 0x12000, scoped, tag = 'internal scratch']
  %s0 = inlined_call_operand.hbm [shape: f32[2,4,256], index: 0, kind: input, shape index: {}]
  %s1 = inlined_call_operand.hbm [shape: f32[2,1,256], index: 1, kind: input, shape index: {}]
  %s2 = inlined_call_operand.vmem [shape: f32[2,12,256], index: 2, kind: output, shape index: {}]
  %s3 = sld [smem:[#allocation0]]
  $region53: #{tpu_custom_call.1} parent=0
    _
  %s5 = ssub.s32 1, %s3
  %s6 = scalar_select 0, %s5, %s3
  $region1: #{tpu_custom_call.1} parent=0
    #allocation2 [shape = 'u8[8192]{0}', space=vmem, size = 0x2000, scoped, tag = 'input window, operand 0']
    #allocation3 [shape = 's32[2]{0}', space=sflag, size = 0x8, scoped, tag = 'scoped memory for tpu_custom_call.1']
    #allocation4 [shape = 'u8[2048]{0}', space=vmem, size = 0x800, scoped, tag = 'input window, operand 1']
    #allocation5 [shape = 's32[2]{0}', space=sflag, size = 0x8, scoped, tag = 'scoped memory for tpu_custom_call.1']
    %7 = vsyncpa [#allocation3], 0
    %s8 = scalar_lea.sflag [#allocation3], 1
    %9 = vsyncpa %s8, 0
    %10 = vsyncpa [#allocation5], 0
    %s11 = scalar_lea.sflag [#allocation5], 1
    %12 = vsyncpa %s11, 0
    loop: start=0, step=1, limit=4
    $region2: #{tpu_custom_call.1} parent=1 // loop_pre_header
      _
    $region3: #{tpu_custom_call.1} parent=1 // loop_header
      %s14 = sphi 0, %s18
      %p15 = scmp.ge.s32.totalorder %s14, 4
      %s21 = sphi 0, %s33
      %s22 = sphi 0, %s29
      %s23 = sphi 0, %s21
      %s24 = sphi 0, %s22
      %s25 = sphi 0, %s23
      %s26 = sphi 0, %s24
      %s38 = sphi 0, %s40
      %s41 = sphi 0, %s38
      %s42 = sphi 0, %s41
      %s58 = sphi 0, %s42
      %s66 = sphi 0, %s68
      %s69 = sphi 0, %s66
      %s70 = sphi 0, %s69
      %s86 = sphi 0, %s70
      %s92 = sphi 0, %s94
      %s95 = sphi 0, %s92
      %s96 = sphi 0, %s95
      %s112 = sphi 0, %s96
    $region4: #{tpu_custom_call.1} parent=1 // loop_header_branch
      %17 = sbr.rel (%p15) target = $region8
    $region5: #{tpu_custom_call.1} parent=1 // loop_body
      %s19 = ssub.s32 %s14, 1
      %s20 = ssub.s32 %s14, 2
      %s27 = sadd.s32 1, %s22
      %p28 = scmp.ge.s32.totalorder %s27, 1
      %s29 = scalar_select %p28, 0, %s27
      %s30 = sadd.s32 1, %s21
      %s31 = scalar_select %p28, %s30, %s21
      %p32 = scmp.ge.s32.totalorder %s31, 2
      %s33 = scalar_select %p32, 0, %s31
      %s34 = ssub.s32 %s21, %s33
      %s35 = ssub.s32 %s22, %s29
      %s36 = sor.u32 %s34, %s35
      %p37 = scmp.eq.s32.totalorder %s36, 0
      %s39 = sadd.s32 %s38, 1
      %s40 = scalar_select %p37, %s38, %s39
      %p43 = pneg %p37
      %p44 = scmp.eq.s32.totalorder %s14, 1
      %p45 = por %p43, %p44
      %p46 = scmp.ne.s32.totalorder %s38, %s41
      %p47 = scmp.eq.s32.totalorder %s14, 0
      %p48 = por %p46, %p47
      %p49 = scmp.ne.s32.totalorder %s38, %s41
      %p50 = scmp.eq.s32.totalorder %s19, 1
      %p51 = por %p49, %p50
      %p52 = scmp.ne.s32.totalorder %s41, %s42
      %p53 = scmp.eq.s32.totalorder %s19, 0
      %p54 = por %p52, %p53
      %p55 = scmp.ne.s32.totalorder %s41, %s42
      %p56 = scmp.eq.s32.totalorder %s20, 1
      %p57 = por %p55, %p56
      %p59 = scmp.ne.s32.totalorder %s42, %s58
      %p60 = scmp.eq.s32.totalorder %s20, 0
      %p61 = por %p59, %p60
      %s62 = ssub.s32 %s21, %s33
      %s63 = ssub.s32 %s22, %s29
      %s64 = sor.u32 %s62, %s63
      %p65 = scmp.eq.s32.totalorder %s64, 0
      %s67 = sadd.s32 %s66, 1
      %s68 = scalar_select %p65, %s66, %s67
      %p71 = pneg %p65
      %p72 = scmp.eq.s32.totalorder %s14, 1
      %p73 = por %p71, %p72
      %p74 = scmp.ne.s32.totalorder %s66, %s69
      %p75 = scmp.eq.s32.totalorder %s14, 0
      %p76 = por %p74, %p75
      %p77 = scmp.ne.s32.totalorder %s66, %s69
      %p78 = scmp.eq.s32.totalorder %s19, 1
      %p79 = por %p77, %p78
      %p80 = scmp.ne.s32.totalorder %s69, %s70
      %p81 = scmp.eq.s32.totalorder %s19, 0
      %p82 = por %p80, %p81
      %p83 = scmp.ne.s32.totalorder %s69, %s70
      %p84 = scmp.eq.s32.totalorder %s20, 1
      %p85 = por %p83, %p84
      %p87 = scmp.ne.s32.totalorder %s70, %s86
      %p88 = scmp.eq.s32.totalorder %s20, 0
      %p89 = por %p87, %p88
      %s90 = ssub.s32 %s21, %s33
      %p91 = scmp.eq.s32.totalorder %s90, 0
      %s93 = sadd.s32 %s92, 1
      %s94 = scalar_select %p91, %s92, %s93
      %p97 = pneg %p91
      %p98 = scmp.eq.s32.totalorder %s14, 1
      %p99 = por %p97, %p98
      %p100 = scmp.ne.s32.totalorder %s92, %s95
      %p101 = scmp.eq.s32.totalorder %s14, 0
      %p102 = por %p100, %p101
      %p103 = scmp.ne.s32.totalorder %s92, %s95
      %p104 = scmp.eq.s32.totalorder %s19, 1
      %p105 = por %p103, %p104
      %p106 = scmp.ne.s32.totalorder %s95, %s96
      %p107 = scmp.eq.s32.totalorder %s19, 0
      %p108 = por %p106, %p107
      %p109 = scmp.ne.s32.totalorder %s95, %s96
      %p110 = scmp.eq.s32.totalorder %s20, 1
      %p111 = por %p109, %p110
      %p113 = scmp.ne.s32.totalorder %s96, %s112
      %p114 = scmp.eq.s32.totalorder %s20, 0
      %p115 = por %p113, %p114
      %p116 = scmp.le.s32.totalorder 1, %s14
      %p117 = scmp.lt.s32.totalorder %s14, 3
      %p118 = pnand %p116, %p117
      %p119 = pneg %p118
      // Predicated region
      $region9: #{tpu_custom_call.1} parent=5 // pred_check
        _
      $region10: #{tpu_custom_call.1} parent=5 // pred_check_branch
        %121 = sbr.rel (%p118) target = $region12
      $region11: #{tpu_custom_call.1} parent=5 // pred_region
        %s122 = ssub.s32 %s14, 1
      $region12: #{tpu_custom_call.1} parent=5 // pred_fallthru
        _
      %p123 = scmp.lt.s32.totalorder %s14, 2
      // Predicated region
      $region13: #{tpu_custom_call.1} parent=5 // pred_check
        %p124 = pneg %p123
      $region14: #{tpu_custom_call.1} parent=5 // pred_check_branch
        %126 = sbr.rel (%p124) target = $region16
      $region15: #{tpu_custom_call.1} parent=5 // pred_region
        // Predicated region
        $region17: #{tpu_custom_call.1} parent=15 // pred_check
          %p127 = pneg %p48
        $region18: #{tpu_custom_call.1} parent=15 // pred_check_branch
          %129 = sbr.rel (%p127) target = $region20
        $region19: #{tpu_custom_call.1} parent=15 // pred_region
          %s130 = sand.u32 %s38, 1
          %s131 = scalar_lea.sflag [#allocation3], %s130
          %s132 = sand.u32 %s38, 1
          %s133 = smul.addr %s132, 8
          %s134 = scalar_lea.vmem [#allocation2], %s133
          %s135 = smul.u32 2, %s22
          %s137 = ssub.s32 128, 128
          %138 = vsyncadd %s131, %s137
          %s139 = smul.addr %s21, 2
          %s140 = sadd.s32 %s135, %s139
          %s141 = smul.addr %s140, 64
          %s142 = scalar_lea.hbm %s0, %s141
          %s144 = sshll.u32 %s134, 4
          %s145 = int_to_ptr.vmem [resolvable:$true] %s144
          %147 = dma.hbm_to_vmem [thread:$0]  %s142, 128, %s145, %s131
        $region20: #{tpu_custom_call.1} parent=15 // pred_fallthru
          _
        // Predicated region
        $region21: #{tpu_custom_call.1} parent=15 // pred_check
          %p148 = pneg %p76
        $region22: #{tpu_custom_call.1} parent=15 // pred_check_branch
          %150 = sbr.rel (%p148) target = $region24
        $region23: #{tpu_custom_call.1} parent=15 // pred_region
          %s151 = sand.u32 %s66, 1
          %s152 = scalar_lea.sflag [#allocation5], %s151
          %s153 = sand.u32 %s66, 1
          %s154 = smul.addr %s153, 2
          %s155 = scalar_lea.vmem [#allocation4], %s154
          %s156 = smul.u32 2, %s22
          %s158 = ssub.s32 32, 32
          %159 = vsyncadd %s152, %s158
          %s160 = smul.addr %s21, 2
          %s161 = sadd.s32 %s156, %s160
          %s162 = smul.addr %s161, 16
          %s163 = scalar_lea.hbm %s1, %s162
          %s165 = sshll.u32 %s155, 4
          %s166 = int_to_ptr.vmem [resolvable:$true] %s165
          %168 = dma.hbm_to_vmem [thread:$0]  %s163, 32, %s166, %s152
        $region24: #{tpu_custom_call.1} parent=15 // pred_fallthru
          _
      $region16: #{tpu_custom_call.1} parent=5 // pred_fallthru
        _
      %p169 = scmp.le.s32.totalorder 1, %s14
      %p170 = scmp.lt.s32.totalorder %s14, 3
      %p171 = pnand %p169, %p170
      %p172 = pneg %p171
      // Predicated region
      $region25: #{tpu_custom_call.1} parent=5 // pred_check
        _
      $region26: #{tpu_custom_call.1} parent=5 // pred_check_branch
        %174 = sbr.rel (%p171) target = $region28
      $region27: #{tpu_custom_call.1} parent=5 // pred_region
        %s175 = ssub.s32 %s14, 1
        %s176 = sand.u32 %s41, 1
        %s177 = scalar_lea.sflag [#allocation3], %s176
        %s178 = sand.u32 %s41, 1
        %s179 = smul.addr %s178, 8
        %s180 = scalar_lea.vmem [#allocation2], %s179
        // Predicated region
        $region29: #{tpu_custom_call.1} parent=27 // pred_check
          %p181 = pneg %p54
        $region30: #{tpu_custom_call.1} parent=27 // pred_check_branch
          %183 = sbr.rel (%p181) target = $region32
        $region31: #{tpu_custom_call.1} parent=27 // pred_region
          %184 = dma.done %s177, 128
        $region32: #{tpu_custom_call.1} parent=27 // pred_fallthru
          _
        %s185 = sand.u32 %s69, 1
        %s186 = scalar_lea.sflag [#allocation5], %s185
        %s187 = sand.u32 %s69, 1
        %s188 = smul.addr %s187, 2
        %s189 = scalar_lea.vmem [#allocation4], %s188
        // Predicated region
        $region33: #{tpu_custom_call.1} parent=27 // pred_check
          %p190 = pneg %p82
        $region34: #{tpu_custom_call.1} parent=27 // pred_check_branch
          %192 = sbr.rel (%p190) target = $region36
        $region35: #{tpu_custom_call.1} parent=27 // pred_region
          %193 = dma.done %s186, 32
        $region36: #{tpu_custom_call.1} parent=27 // pred_fallthru
          _
        %s194 = sand.u32 %s41, 1
        %s195 = scalar_lea.sflag [#allocation3], %s194
        %s196 = sand.u32 %s41, 1
        %s197 = smul.addr %s196, 8
        %s198 = scalar_lea.vmem [#allocation2], %s197
        %p199 = pneg %p54
        %p200 = pneg %p51
        %s201 = sand.u32 %s69, 1
        %s202 = scalar_lea.sflag [#allocation5], %s201
        %s203 = sand.u32 %s69, 1
        %s204 = smul.addr %s203, 2
        %s205 = scalar_lea.vmem [#allocation4], %s204
        %p206 = pneg %p82
        %p207 = pneg %p79
        %p208 = pneg %p108
        %p209 = pneg %p105
        %p210 = scmp.lt.s32.totalorder %s23, 1
        %s211 = scalar_select %p210, %s23, 1
        %s212 = smul.addr %s211, 4
        %s213 = smul.addr %s212, 8
        %s214 = scalar_lea.vmem %s2, %s213
        %s215 = smul.u32 2, %s24
        %s216 = smul.u32 2, %s24
        %p217 = scmp.lt.s32.totalorder %s23, 1
        %s218 = scalar_select %p217, %s23, 1
        %s219 = smul.addr %s218, 4
        %s220 = smul.addr %s219, 8
        %s221 = scalar_lea.vmem %s2, %s220
        %p222 = scmp.eq.s32.totalorder %s24, 0
        // Predicated region
        $region37: #{tpu_custom_call.1} parent=27 // pred_check
          %p223 = pneg %p222
        $region38: #{tpu_custom_call.1} parent=27 // pred_check_branch
          %225 = sbr.rel (%p223) target = $region40
        $region39: #{tpu_custom_call.1} parent=27 // pred_region
          %226 = vst [vmem:[%s221] sm:$0xff] 0.0
          %227 = vst [vmem:[%s221 + $0x8] sm:$0xff] 0.0
          %228 = vst [vmem:[%s221 + $0x10] sm:$0xf] 0.0
          %229 = vst [vmem:[%s221 + $0x18] sm:$0xf] 0.0
        $region40: #{tpu_custom_call.1} parent=27 // pred_fallthru
          _
        %v230 = vld [vmem:[%s180] sm:$0xff]
        %v231 = vld [vmem:[%s189] sm:$0x3]
        %v233 = vcombine.high %v230, %v230
        %vm235 = vcmask 1043456
        %v236 = vsel %vm235, %v230, -inf
        %v237 = vrot.slane %v236, 4
        %v238 = vmax.f32 %v236, %v237
        %v239 = vrot.slane %v238, 2
        %v240 = vmax.f32 %v238, %v239
        %v241 = vrot.slane %v240, 1
        %v242 = vmax.f32 %v240, %v241
        %v243 = vsel %vm235, %v233, -inf
        %v244 = vrot.slane %v243, 4
        %v245 = vmax.f32 %v243, %v244
        %v246 = vrot.slane %v245, 2
        %v247 = vmax.f32 %v245, %v246
        %v248 = vrot.slane %v247, 1
        %v249 = vmax.f32 %v247, %v248
        %v252 = vcombine.low %v242, %v249
        %v254 = vsub.f32 %v230, %v252
        %v255 = vmul.f32 %v254, 1.442695
        %v256 = vpow.pop %v255
        %v258 = vcombine.high %v256, %v256
        %v260 = vsel %vm235, %v256, 0.0
        %v261 = vrot.slane %v260, 4
        %v262 = vadd.f32 %v260, %v261
        %v263 = vrot.slane %v262, 2
        %v264 = vadd.f32 %v262, %v263
        %v265 = vrot.slane %v264, 1
        %v266 = vadd.f32 %v264, %v265
        %v267 = vsel %vm235, %v258, 0.0
        %v268 = vrot.slane %v267, 4
        %v269 = vadd.f32 %v267, %v268
        %v270 = vrot.slane %v269, 2
        %v271 = vadd.f32 %v269, %v270
        %v272 = vrot.slane %v271, 1
        %v273 = vadd.f32 %v271, %v272
        %v276 = vcombine.low %v266, %v273
        %v278 = vrcp.pop %v276
        %v279 = vmul.f32 %v256, %v278
        %vm280 = vcmp.ge.f32.partialorder %v231, 0.25
        %v281 = vsel %vm280, 1, 0
        %vm282 = vcmp.ge.f32.partialorder %v231, 0.5
        %v283 = vsel %vm282, 2, %v281
        %vm284 = vcmp.ge.f32.partialorder %v231, 0.75
        %v285 = vsel %vm284, 3, %v283
        %v286 = vlaneseq
        %v287 = vshrl.u32 %v286, 7
        %v288 = vlaneseq
        %v289 = vshrl.u32 %v288, 7
        %v290 = vsub.s32 0, %v289
        %v291 = vrot.slane %v285, %v290
        %v292 = vlaneseq
        %v293 = vshrl.u32 %v292, 7
        %v294 = vsub.s32 1, %v293
        %v295 = vrot.slane %v285, %v294
        %vm296 = vcmp.eq.s32.totalorder %v287, %v291
        %vm297 = vcmp.eq.s32.totalorder %v287, %v295
        %v298 = vsel %vm296, 1, 0
        %v299 = vsel %vm297, 1, 0
        %v300 = vcvt.s32.f32 %v298
        %v301 = vcvt.s32.f32 %v299
        %v302 = vld [vmem:[%s221] sm:$0xf]
        %v303 = vld [vmem:[%s221 + $0x8] sm:$0xf]
        %v306 = vcombine.low %v300, %v301
        %v308 = vmul.f32 %v279, %v306
        %v310 = vcombine.high %v308, %v308
        %v312 = vadd.f32 %v302, %v308
        %v313 = vadd.f32 %v303, %v310
        %314 = vst [vmem:[%s221] sm:$0xf] %v312
        %315 = vst [vmem:[%s221 + $0x8] sm:$0xf] %v313
        %v316 = vld [vmem:[%s221] sm:$0xf0]
        %v317 = vld [vmem:[%s221 + $0x8] sm:$0xf0]
        %v318 = vrot.slane %v300, 4
        %v319 = vrot.slane %v301, 4
        %v322 = vadd.f32 %v316, %v318
        %v323 = vadd.f32 %v317, %v319
        %324 = vst [vmem:[%s221] sm:$0xf0] %v322
        %325 = vst [vmem:[%s221 + $0x8] sm:$0xf0] %v323
        %v326 = vld [vmem:[%s221 + $0x10] sm:$0xf]
        %v327 = vld [vmem:[%s221 + $0x18] sm:$0xf]
        %v328 = vmul.f32 %v279, %v279
        %v330 = vcombine.high %v328, %v328
        %v332 = vadd.f32 %v326, %v328
        %v333 = vadd.f32 %v327, %v330
        %334 = vst [vmem:[%s221 + $0x10] sm:$0xf] %v332
        %335 = vst [vmem:[%s221 + $0x18] sm:$0xf] %v333
        %p336 = scmp.lt.s32.totalorder %s23, 1
        %s337 = scalar_select %p336, %s23, 1
        %s338 = smul.addr %s337, 4
        %s339 = smul.addr %s338, 8
        %s340 = scalar_lea.vmem %s2, %s339
        // Predicated region
        $region41: #{tpu_custom_call.1} parent=27 // pred_check
          %p341 = pneg %p105
        $region42: #{tpu_custom_call.1} parent=27 // pred_check_branch
          %343 = sbr.rel (%p341) target = $region44
        $region43: #{tpu_custom_call.1} parent=27 // pred_region
          _
        $region44: #{tpu_custom_call.1} parent=27 // pred_fallthru
          _
      $region28: #{tpu_custom_call.1} parent=5 // pred_fallthru
        _
      %p344 = scmp.le.s32.totalorder 2, %s14
      // Predicated region
      $region45: #{tpu_custom_call.1} parent=5 // pred_check
        %p345 = pneg %p344
      $region46: #{tpu_custom_call.1} parent=5 // pred_check_branch
        %347 = sbr.rel (%p345) target = $region48
      $region47: #{tpu_custom_call.1} parent=5 // pred_region
        %s348 = ssub.s32 %s14, 2
        // Predicated region
        $region49: #{tpu_custom_call.1} parent=47 // pred_check
          %p349 = pneg %p111
        $region50: #{tpu_custom_call.1} parent=47 // pred_check_branch
          %351 = sbr.rel (%p349) target = $region52
        $region51: #{tpu_custom_call.1} parent=47 // pred_region
          %p352 = scmp.lt.s32.totalorder %s25, 1
          %s353 = scalar_select %p352, %s25, 1
          %s354 = smul.addr %s353, 4
          %s355 = smul.addr %s354, 8
          %s356 = scalar_lea.vmem %s2, %s355
        $region52: #{tpu_custom_call.1} parent=47 // pred_fallthru
          _
      $region48: #{tpu_custom_call.1} parent=5 // pred_fallthru
        _
    $region6: #{tpu_custom_call.1} parent=1 // loop_footer
      %s18 = sadd.s32 1, %s14
    $region7: #{tpu_custom_call.1} parent=1 // loop_footer_branch
      %13 = sbr.rel target = $region3
    $region8: #{tpu_custom_call.1} parent=1 // loop_exit
      _
    %357 = vsyncpa [#allocation3], 1
    %s358 = scalar_lea.sflag [#allocation3], 1
    %359 = vsyncpa %s358, 1
    %360 = vsyncpa [#allocation5], 1
    %s361 = scalar_lea.sflag [#allocation5], 1
    %362 = vsyncpa %s361, 1

</llo_original>
